<compile_context>
chip_gen: v7x
topology: tpu7x:2x2x1
jax: 0.10.0
libtpu: 0.0.40
codegen_flags: <defaults>
</compile_context>

<pallas_src>
import functools

import jax
import jax.numpy as jnp
from jax.experimental import pallas as pl
from jax.experimental.pallas import tpu as pltpu


# ---------------------------------------------------------------------------
# Generation-aware VMEM sizing
# ---------------------------------------------------------------------------
@functools.lru_cache(maxsize=1)
def _vmem_capacity_bytes():
    try:
        cap = getattr(pltpu.get_tpu_info(), "vmem_capacity_bytes", None)
        if cap:
            return int(cap)
    except Exception:
        pass
    return 64 * 1024 * 1024  # conservative fallback (v7x per-TC VMEM)


def _vmem_limit_bytes():
    # 3/4 of physical leaves headroom for double-buffering + internal scratch.
    return int(_vmem_capacity_bytes() * 3 // 4)


def _pick_tile(dim, prefs):
    """Largest preferred tile that divides `dim`, else the full dim."""
    for p in prefs:
        if dim % p == 0:
            return p
    return dim


def _attention_tiles(seq_len):
    cap = _vmem_capacity_bytes()
    tq = _pick_tile(seq_len, (128,))
    # v5e/v6e (128 MiB VMEM): tk up to 512; v7x (64 MiB): cap at 256.
    tk_prefs = (512, 256, 128) if cap >= 96 * 1024 * 1024 else (256, 128)
    tk = _pick_tile(seq_len, tk_prefs)
    return tq, tk


# ---------------------------------------------------------------------------
# Linear projection kernel: y = x @ w + b, tiled over rows AND columns.
# ---------------------------------------------------------------------------
def _linear_kernel(x_ref, w_ref, b_ref, o_ref):
    acc = jnp.dot(x_ref[...], w_ref[...], preferred_element_type=jnp.float32)
    o_ref[...] = (acc + b_ref[...]).astype(o_ref.dtype)


def pallas_linear(x, w, b, *, out_dtype, tile_m=512, tile_n=512):
    # x: [N, Din] (compute dtype), w: [Din, Dout] (compute dtype), b: [1, Dout] f32.
    N, Din = x.shape
    Dout = w.shape[1]
    tm = _pick_tile(N, (tile_m, 256, 128))
    tn = _pick_tile(Dout, (tile_n, 256, 128))
    return pl.pallas_call(
        _linear_kernel,
        grid=(N // tm, Dout // tn),
        in_specs=[
            pl.BlockSpec((tm, Din), lambda i, j: (i, 0)),
            pl.BlockSpec((Din, tn), lambda i, j: (0, j)),
            pl.BlockSpec((1, tn), lambda i, j: (0, j)),
        ],
        out_specs=pl.BlockSpec((tm, tn), lambda i, j: (i, j)),
        out_shape=jax.ShapeDtypeStruct((N, Dout), out_dtype),
        compiler_params=pltpu.CompilerParams(
            dimension_semantics=("parallel", "parallel"),
            vmem_limit_bytes=_vmem_limit_bytes(),
        ),
    )(x, w, b)


# ---------------------------------------------------------------------------
# Flash-style attention (need_weights=False): online softmax over KV tiles.
# Inputs: packed qkv [3, B, H, S, hd] (split folded into the index_maps).
# Output: lane-dense [B, S, E].
# ---------------------------------------------------------------------------
def _flash_attention_kernel(*refs, has_amask, has_pmask, num_heads, head_dim):
    q_ref, k_ref, v_ref = refs[:3]
    i = 3
    amask_ref = refs[i] if has_amask else None
    i += int(has_amask)
    pmask_ref = refs[i] if has_pmask else None
    i += int(has_pmask)
    o_ref = refs[i]
    m_sc, l_sc, acc_sc = refs[i + 1:i + 4]

    ki = pl.program_id(2)

    @pl.when(ki == 0)
    def _():
        m_sc[...] = jnp.full(m_sc.shape, -jnp.inf, m_sc.dtype)
        l_sc[...] = jnp.zeros(l_sc.shape, l_sc.dtype)
        acc_sc[...] = jnp.zeros(acc_sc.shape, acc_sc.dtype)

    q = q_ref[0, 0]                 # [H, tq, hd]  (1/sqrt(hd) folded into w_in)
    k = k_ref[0, 0]                 # [H, tk, hd]
    v = v_ref[0, 0]                 # [H, tk, hd]

    # Batched q @ k^T contracting trailing hd (bf16 operands, f32 accumulate).
    s = jnp.einsum("hqd,hkd->hqk", q, k,
                   preferred_element_type=jnp.float32)        # [H, tq, tk] f32
    if has_amask:
        s = s + amask_ref[...]                                # (1, tq, tk) broadcast
    if has_pmask:
        # masked_fill semantics of key_padding_mask (PyTorch module parity).
        s = jnp.where(pmask_ref[...] != 0.0, jnp.float32(-10000.0), s)

    m_prev = m_sc[...]
    m_new = jnp.maximum(m_prev, jnp.max(s, axis=-1, keepdims=True))
    alpha = jnp.exp(m_prev - m_new)
    p = jnp.exp(s - m_new)
    l_sc[...] = alpha * l_sc[...] + jnp.sum(p, axis=-1, keepdims=True)
    acc_sc[...] = alpha * acc_sc[...] + jnp.einsum(
        "hqk,hkd->hqd", p.astype(v.dtype), v,
        preferred_element_type=jnp.float32)
    m_sc[...] = m_new

    @pl.when(ki == pl.num_programs(2) - 1)
    def _():
        inv_l = pl.reciprocal(l_sc[...], approx=True)          # EUP slot, ~free
        out = (acc_sc[...] * inv_l).astype(o_ref.dtype)        # [H, tq, hd]
        # Lane-dense writeback: each head lands in its E-column slice of the
        # (1, tq, E) output block; the HBM DMA of the block is full-lane-width.
        for h in range(num_heads):
            o_ref[0, :, h * head_dim:(h + 1) * head_dim] = out[h]


def pallas_attention_flash(qkv3, amask, pmask):
    _, B, H, S, hd = qkv3.shape
    E = H * hd
    tq, tk = _attention_tiles(S)
    has_amask = amask is not None
    has_pmask = pmask is not None

    kernel = functools.partial(
        _flash_attention_kernel, has_amask=has_amask, has_pmask=has_pmask,
        num_heads=H, head_dim=hd)

    in_specs = [
        pl.BlockSpec((1, 1, H, tq, hd), lambda b, qi, ki: (0, b, 0, qi, 0)),
        pl.BlockSpec((1, 1, H, tk, hd), lambda b, qi, ki: (1, b, 0, ki, 0)),
        pl.BlockSpec((1, 1, H, tk, hd), lambda b, qi, ki: (2, b, 0, ki, 0)),
    ]
    inputs = [qkv3, qkv3, qkv3]
    if has_amask:
        in_specs.append(pl.BlockSpec((1, tq, tk), lambda b, qi, ki: (b, qi, ki)))
        inputs.append(amask)
    if has_pmask:
        in_specs.append(pl.BlockSpec((1, 1, tk), lambda b, qi, ki: (b, 0, ki)))
        inputs.append(pmask)

    # TODO(synk): if tk=256 on v7x exposes the K/V DMA, add pipeline_mode=pl.Buffered(3).
    return pl.pallas_call(
        kernel,
        grid=(B, S // tq, S // tk),
        in_specs=in_specs,
        out_specs=pl.BlockSpec((1, tq, E), lambda b, qi, ki: (b, qi, 0)),
        out_shape=jax.ShapeDtypeStruct((B, S, E), qkv3.dtype),
        scratch_shapes=[
            pltpu.VMEM((H, tq, 1), jnp.float32),    # running max
            pltpu.VMEM((H, tq, 1), jnp.float32),    # running denom
            pltpu.VMEM((H, tq, hd), jnp.float32),   # running numerator
        ],
        compiler_params=pltpu.CompilerParams(
            dimension_semantics=("parallel", "parallel", "arbitrary"),
            vmem_limit_bytes=_vmem_limit_bytes(),
        ),
    )(*inputs)


# ---------------------------------------------------------------------------
# Full-score attention (need_weights=True): query-tiled, also writes the
# [B, H, S, S] probabilities.  Debug path; exact softmax kept for parity.
# ---------------------------------------------------------------------------
def _attention_weights_kernel(*refs, has_amask, has_pmask, num_heads, head_dim):
    q_ref, k_ref, v_ref = refs[:3]
    i = 3
    amask_ref = refs[i] if has_amask else None
    i += int(has_amask)
    pmask_ref = refs[i] if has_pmask else None
    i += int(has_pmask)
    o_ref, p_ref = refs[i], refs[i + 1]

    q = q_ref[0, 0]                 # [H, tq, hd]
    k = k_ref[0, 0]                 # [H, S, hd]
    v = v_ref[0, 0]                 # [H, S, hd]
    s = jnp.einsum("hqd,hkd->hqk", q, k,
                   preferred_element_type=jnp.float32)        # [H, tq, S]
    if has_amask:
        s = s + amask_ref[...]
    if has_pmask:
        s = jnp.where(pmask_ref[...] != 0.0, jnp.float32(-10000.0), s)
    s = s - jnp.max(s, axis=-1, keepdims=True)
    e = jnp.exp(s)
    p = e / jnp.sum(e, axis=-1, keepdims=True)
    # TODO(synk): dropout on attention probabilities omitted (eval-mode identity).
    p_ref[0] = p.astype(p_ref.dtype)
    out = jnp.einsum("hqk,hkd->hqd", p.astype(v.dtype), v,
                     preferred_element_type=jnp.float32).astype(o_ref.dtype)
    for h in range(num_heads):
        o_ref[0, :, h * head_dim:(h + 1) * head_dim] = out[h]


def pallas_attention_with_weights(qkv3, amask, pmask):
    _, B, H, S, hd = qkv3.shape
    E = H * hd
    tq = _pick_tile(S, (256, 128))
    has_amask = amask is not None
    has_pmask = pmask is not None

    kernel = functools.partial(
        _attention_weights_kernel, has_amask=has_amask, has_pmask=has_pmask,
        num_heads=H, head_dim=hd)

    in_specs = [
        pl.BlockSpec((1, 1, H, tq, hd), lambda b, qi: (0, b, 0, qi, 0)),
        pl.BlockSpec((1, 1, H, S, hd), lambda b, qi: (1, b, 0, 0, 0)),
        pl.BlockSpec((1, 1, H, S, hd), lambda b, qi: (2, b, 0, 0, 0)),
    ]
    inputs = [qkv3, qkv3, qkv3]
    if has_amask:
        in_specs.append(pl.BlockSpec((1, tq, S), lambda b, qi: (b, qi, 0)))
        inputs.append(amask)
    if has_pmask:
        in_specs.append(pl.BlockSpec((1, 1, S), lambda b, qi: (b, 0, 0)))
        inputs.append(pmask)

    return pl.pallas_call(
        kernel,
        grid=(B, S // tq),
        in_specs=in_specs,
        out_specs=(
            pl.BlockSpec((1, tq, E), lambda b, qi: (b, qi, 0)),
            pl.BlockSpec((1, H, tq, S), lambda b, qi: (b, 0, qi, 0)),
        ),
        out_shape=(
            jax.ShapeDtypeStruct((B, S, E), qkv3.dtype),
            jax.ShapeDtypeStruct((B, H, S, S), jnp.float32),
        ),
        compiler_params=pltpu.CompilerParams(
            dimension_semantics=("parallel", "parallel"),
            vmem_limit_bytes=_vmem_limit_bytes(),
        ),
    )(*inputs)


# ---------------------------------------------------------------------------
# Module-equivalent forward
# ---------------------------------------------------------------------------
def mhsa_forward(params, query, padding_mask=None, attention_mask=None,
                 need_weights=False, compute_dtype=jnp.bfloat16):
    """query: [S, B, E] ; padding_mask: [B, S] bool ; attention_mask: [B, S, S].

    compute_dtype=jnp.bfloat16 (default) feeds the MXU bf16 operands with f32
    accumulation; pass jnp.float32 for tight numerical parity.
    """
    S, B, E = query.shape
    H = params["num_heads"]
    hd = E // H
    scaling = float(hd) ** (-0.5)

    # Fold 1/sqrt(head_dim) into the Q columns of the in-projection — the
    # attention inner loop never rescales q (mathematically identical).
    col_scale = jnp.concatenate(
        [jnp.full((E,), scaling, jnp.float32), jnp.ones((2 * E,), jnp.float32)])
    w_in = (params["w_in"].astype(jnp.float32) * col_scale[None, :]).astype(compute_dtype)
    b_in = params["b_in"].astype(jnp.float32) * col_scale[None, :]

    # In-projection on a row-major [S*B, E] slab (tiled rows x cols).
    x2 = query.reshape(S * B, E).astype(compute_dtype)
    qkv = pallas_linear(x2, w_in, b_in, out_dtype=compute_dtype)   # [S*B, 3E]

    # Single fused layout pass: [S*B, 3E] -> [3, B, H, S, hd].  The q/k/v split
    # is folded into the attention BlockSpec index_maps (leading dim 0/1/2).
    qkv3 = jnp.transpose(qkv.reshape(S, B, 3, H, hd), (2, 1, 3, 0, 4))

    # Masks kept f32 for exact parity; absent masks are specialized away.
    amask = attention_mask.astype(jnp.float32) if attention_mask is not None else None
    pmask = (padding_mask.astype(jnp.float32).reshape(B, 1, S)
             if padding_mask is not None else None)

    if need_weights:
        attn_out, attn_w = pallas_attention_with_weights(qkv3, amask, pmask)
    else:
        attn_out = pallas_attention_flash(qkv3, amask, pmask)     # [B, S, E]
        attn_w = None

    # Out-projection directly on [B*S, E] rows (no transpose of attn_out).
    out2 = pallas_linear(attn_out.reshape(B * S, E),
                         params["w_out"].astype(compute_dtype),
                         params["b_out"].astype(jnp.float32),
                         out_dtype=jnp.float32)
    out = jnp.transpose(out2.reshape(B, S, E), (1, 0, 2))          # -> [S, B, E]
    return out, attn_w


# ---------------------------------------------------------------------------
# Pure-JAX reference (PyTorch semantics) for the correctness check
# ---------------------------------------------------------------------------
def mhsa_reference(params, query, padding_mask, attention_mask):
    S, B, E = query.shape
    H = params["num_heads"]
    hd = E // H
    scaling = float(hd) ** (-0.5)

    qkv = query @ params["w_in"] + params["b_in"][0]
    q, k, v = jnp.split(qkv, 3, axis=-1)
    q = q * scaling

    def heads(t):
        return jnp.transpose(t.reshape(S, B * H, hd), (1, 0, 2))
    q, k, v = heads(q), heads(k), heads(v)

    s = jnp.einsum("nqd,nkd->nqk", q, k).reshape(B, H, S, S)
    if attention_mask is not None:
        s = s + attention_mask[:, None, :, :].astype(jnp.float32)
    if padding_mask is not None:
        s = jnp.where(padding_mask[:, None, None, :], -10000.0, s)
    p = jax.nn.softmax(s.reshape(B * H, S, S), axis=-1)
    o = jnp.einsum("nqk,nkd->nqd", p, v)
    o = jnp.transpose(o, (1, 0, 2)).reshape(S, B, E)
    o = o @ params["w_out"] + params["b_out"][0]
    return o, p.reshape(B, H, S, S)


if __name__ == "__main__":
    S, B, E, H = 8, 2, 32, 4   # seq, batch, embed_dim, num_heads (head_dim=8)

    key = jax.random.PRNGKey(0)
    k1, k2, k3, k4, k5, k6, k7 = jax.random.split(key, 7)

    params = {
        "num_heads": H,
        # stored transposed vs. PyTorch nn.Linear.weight so that y = x @ w + b
        "w_in": jax.random.normal(k1, (E, 3 * E), jnp.float32) * 0.05,
        "b_in": jax.random.normal(k2, (1, 3 * E), jnp.float32) * 0.05,
        "w_out": jax.random.normal(k3, (E, E), jnp.float32) * 0.05,
        "b_out": jax.random.normal(k4, (1, E), jnp.float32) * 0.05,
    }

    query = jax.random.normal(k5, (S, B, E), jnp.float32)
    attention_mask = jax.random.normal(k6, (B, S, S), jnp.float32)
    padding_mask = jax.random.uniform(k7, (B, S)) < 0.2   # bool [B, S]

    ref_out, ref_w = mhsa_reference(params, query, padding_mask, attention_mask)
    ref_out_nm, _ = mhsa_reference(params, query, None, None)

    # Path 1: need_weights=True, f32 (full-score kernel, exact softmax) — tight parity.
    out_w, weights = mhsa_forward(params, query, padding_mask, attention_mask,
                                  need_weights=True, compute_dtype=jnp.float32)
    # Path 2: flash kernel, f32 operands (approx-reciprocal normalization).
    out_f32, no_w = mhsa_forward(params, query, padding_mask, attention_mask,
                                 need_weights=False, compute_dtype=jnp.float32)
    # Path 3: flash kernel, default bf16 operands (hot path).
    out_bf16, _ = mhsa_forward(params, query, padding_mask, attention_mask,
                               need_weights=False)
    # Path 4: flash kernel with no masks (mask-specialized variant), f32.
    out_nm, _ = mhsa_forward(params, query, None, None,
                             need_weights=False, compute_dtype=jnp.float32)

    out_w, weights, out_f32, out_bf16, out_nm = jax.block_until_ready(
        (out_w, weights, out_f32, out_bf16, out_nm))

    assert out_w.shape == (S, B, E) and weights.shape == (B, H, S, S)
    assert no_w is None
    # f32 full-score path: tight parity.
    assert jnp.allclose(out_w, ref_out, atol=2e-4, rtol=2e-4)
    assert jnp.allclose(weights, ref_w, atol=2e-4, rtol=2e-4)
    # flash paths: approx reciprocal / bf16 operands -> relaxed tolerances.
    assert jnp.allclose(out_f32, ref_out, atol=2e-2, rtol=2e-2)
    assert jnp.allclose(out_bf16, ref_out, atol=3e-2, rtol=3e-2)
    assert jnp.allclose(out_nm, ref_out_nm, atol=2e-2, rtol=2e-2)

    print("KERNEL_OK")
</pallas_src>

<mosaic_0001>
module attributes {stable_mosaic.version = 11 : i64} {
  func.func @_linear_kernel(%arg0: i32, %arg1: i32, %arg2: memref<16x32xf32, #tpu.memory_space<vmem>>, %arg3: memref<32x96xf32, #tpu.memory_space<vmem>>, %arg4: memref<1x96xf32, #tpu.memory_space<vmem>>, %arg5: memref<16x96xf32, #tpu.memory_space<vmem>>) attributes {dimension_semantics = [#tpu.dimension_semantics<parallel>, #tpu.dimension_semantics<parallel>], iteration_bounds = array<i64: 1, 1>, scalar_prefetch = 0 : i64, scratch_operands = 0 : i64, tpu.core_type = #tpu.core_type<tc>, window_params = [{transform_indices = @transform_0, window_bounds = array<i64: 16, 32>}, {transform_indices = @transform_1, window_bounds = array<i64: 32, 96>}, {transform_indices = @transform_2, window_bounds = array<i64: 1, 96>}, {transform_indices = @transform_3, window_bounds = array<i64: 16, 96>}]} {
    %c0 = arith.constant 0 : index
    %c0_0 = arith.constant 0 : index
    %0 = vector.load %arg2[%c0, %c0_0] : memref<16x32xf32, #tpu.memory_space<vmem>>, vector<16x32xf32>
    %c0_1 = arith.constant 0 : index
    %c0_2 = arith.constant 0 : index
    %1 = vector.load %arg3[%c0_1, %c0_2] : memref<32x96xf32, #tpu.memory_space<vmem>>, vector<32x96xf32>
    %cst = arith.constant dense<0.000000e+00> : vector<16x96xf32>
    %2 = tpu.matmul %0, %1, %cst {dimension_numbers = #tpu.dot_dimension_numbers<[1], [0], [0], [1], [0, 0, 1, 1], [], []>} : vector<16x32xf32>, vector<32x96xf32>, vector<16x96xf32> -> vector<16x96xf32>
    %c0_3 = arith.constant 0 : index
    %c0_4 = arith.constant 0 : index
    %3 = vector.load %arg4[%c0_3, %c0_4] : memref<1x96xf32, #tpu.memory_space<vmem>>, vector<1x96xf32>
    %4 = vector.broadcast %3 : vector<1x96xf32> to vector<16x96xf32>
    %5 = arith.addf %2, %4 : vector<16x96xf32>
    %c0_5 = arith.constant 0 : index
    %c0_6 = arith.constant 0 : index
    %6 = vector.load %arg5[%c0_5, %c0_6] : memref<16x96xf32, #tpu.memory_space<vmem>>, vector<16x96xf32>
    tpu.vector_store %arg5[%c0_5, %c0_6], %5 {strides = array<i32>} : memref<16x96xf32, #tpu.memory_space<vmem>>, vector<16x96xf32>,
    return
  }
  func.func @transform_0(%arg0: i32, %arg1: i32) -> (i32, i32) {
    %c0_i32 = arith.constant 0 : i32
    %c0_i32_0 = arith.constant 0 : i32
    return %arg0, %c0_i32 : i32, i32
  }
  func.func @transform_1(%arg0: i32, %arg1: i32) -> (i32, i32) {
    %c0_i32 = arith.constant 0 : i32
    %c0_i32_0 = arith.constant 0 : i32
    return %c0_i32, %arg1 : i32, i32
  }
  func.func @transform_2(%arg0: i32, %arg1: i32) -> (i32, i32) {
    %c0_i32 = arith.constant 0 : i32
    %c0_i32_0 = arith.constant 0 : i32
    return %c0_i32, %arg1 : i32, i32
  }
  func.func @transform_3(%arg0: i32, %arg1: i32) -> (i32, i32) {
    %c0_i32 = arith.constant 0 : i32
    return %arg0, %arg1 : i32, i32
  }
}

</mosaic_0001>

<llo_original>
// kernel: tpu_custom_call.1
$region0: #{tpu_custom_call.1}
  #allocation0 [shape = 'u32[]', space=smem, size = 0x4, offset = 0x4, fixed_abs, tag = 'smem constant byte address 0x4 - core index']
  #allocation1 [shape = 'u32[144,128]{1,0:T(1,128)}', space=vmem, size = 0x12000, scoped, tag = 'internal scratch']
  %s0 = inlined_call_operand.hbm [shape: f32[16,32], index: 0, kind: input, shape index: {}]
  %s1 = inlined_call_operand.hbm [shape: f32[32,96], index: 1, kind: input, shape index: {}]
  %s2 = inlined_call_operand.vmem [shape: f32[1,96], index: 2, kind: input, shape index: {}]
  %s3 = inlined_call_operand.hbm [shape: f32[16,96], index: 3, kind: output, shape index: {}]
  %s4 = sld [smem:[#allocation0]]
  $region30: #{tpu_custom_call.1} parent=0
    _
  %s6 = ssub.s32 1, %s4
  %s7 = scalar_select 0, %s6, %s4
  $region1: #{tpu_custom_call.1} parent=0
    #allocation2 [shape = 'u8[8192]{0}', space=vmem, size = 0x2000, scoped, tag = 'input window, operand 0, single buffered']
    #allocation3 [shape = 's32[1]{0}', space=sflag, size = 0x4, scoped, tag = 'scoped memory for tpu_custom_call.1']
    #allocation4 [shape = 's32[1]{0}', space=sflag, size = 0x4, scoped, tag = 'scoped memory for tpu_custom_call.1']
    #allocation5 [shape = 'u8[16384]{0}', space=vmem, size = 0x4000, scoped, tag = 'input window, operand 1, single buffered']
    #allocation6 [shape = 's32[1]{0}', space=sflag, size = 0x4, scoped, tag = 'scoped memory for tpu_custom_call.1']
    #allocation7 [shape = 'u8[8192]{0}', space=vmem, size = 0x2000, scoped, tag = 'output window, operand 0, single buffered']
    %8 = vsyncpa [#allocation3], 0
    %9 = vsyncpa [#allocation6], 0
    %10 = vsyncpa [#allocation4], 0
    // Predicated region
    $region2: #{tpu_custom_call.1} parent=1 // pred_check
      _
    $region3: #{tpu_custom_call.1} parent=1 // pred_check_branch
      %12 = sbr.rel (0) target = $region5
    $region4: #{tpu_custom_call.1} parent=1 // pred_region
      %s14 = ssub.s32 256, 256
      %15 = vsyncadd [#allocation3], %s14
      %s16 = sshll.u32 [#allocation2], 4
      %s17 = int_to_ptr.vmem [resolvable:$true] %s16
      %22 = dma.hbm_to_vmem [thread:$0]  %s0, 256, %s17, [#allocation3], 128, 128, 8
    $region5: #{tpu_custom_call.1} parent=1 // pred_fallthru
      _
    // Predicated region
    $region6: #{tpu_custom_call.1} parent=1 // pred_check
      _
    $region7: #{tpu_custom_call.1} parent=1 // pred_check_branch
      %24 = sbr.rel (0) target = $region9
    $region8: #{tpu_custom_call.1} parent=1 // pred_region
      %s26 = ssub.s32 512, 512
      %27 = vsyncadd [#allocation6], %s26
      %s28 = sshll.u32 [#allocation5], 4
      %s29 = int_to_ptr.vmem [resolvable:$true] %s28
      %34 = dma.hbm_to_vmem [thread:$0]  %s1, 512, %s29, [#allocation6], 128, 128, 8
    $region9: #{tpu_custom_call.1} parent=1 // pred_fallthru
      _
    // Predicated region
    $region10: #{tpu_custom_call.1} parent=1 // pred_check
      _
    $region11: #{tpu_custom_call.1} parent=1 // pred_check_branch
      %36 = sbr.rel (0) target = $region13
    $region12: #{tpu_custom_call.1} parent=1 // pred_region
      _
    $region13: #{tpu_custom_call.1} parent=1 // pred_fallthru
      _
    // Predicated region
    $region14: #{tpu_custom_call.1} parent=1 // pred_check
      _
    $region15: #{tpu_custom_call.1} parent=1 // pred_check_branch
      %38 = sbr.rel (0) target = $region17
    $region16: #{tpu_custom_call.1} parent=1 // pred_region
      %39 = dma.done [#allocation3], 256
    $region17: #{tpu_custom_call.1} parent=1 // pred_fallthru
      _
    // Predicated region
    $region18: #{tpu_custom_call.1} parent=1 // pred_check
      _
    $region19: #{tpu_custom_call.1} parent=1 // pred_check_branch
      %41 = sbr.rel (0) target = $region21
    $region20: #{tpu_custom_call.1} parent=1 // pred_region
      %42 = dma.done [#allocation6], 512
    $region21: #{tpu_custom_call.1} parent=1 // pred_fallthru
      _
    %v43 = vld [vmem:[#allocation2] sm:$0xff]
    %v44 = vld [vmem:[#allocation2 + $0x8] sm:$0xff]
    %v45 = vld [vmem:[#allocation5] sm:$0xff]
    %v46 = vld [vmem:[#allocation5 + $0x8] sm:$0xff]
    %v47 = vld [vmem:[#allocation5 + $0x10] sm:$0xff]
    %v48 = vld [vmem:[#allocation5 + $0x18] sm:$0xff]
    %v49 = vld [vmem:[%s2] sm:$0x1]
    %v51 = vlaneseq
    %v52 = vshrl.u32 %v51, 7
    %v53 = vsub.s32 0, %v52
    %v54 = vrot.slane %v49, %v53
    %vm56 = vcmask 261120
    %v58 = vsel %vm56, %v43, 0
    %v61 = vsel %vm56, %v44, 0
    %63 = vmatprep.subr.mxu0 0.0
    %64 = vmatpush1.msra.mxu0 %v45
    %65 = vmatprep.subr.mxu0 0.0
    %66 = vmatpush1.msra.mxu0 %v46
    %67 = vmatprep.subr.mxu0 0.0
    %68 = vmatpush1.msra.mxu0 %v47
    %69 = vmatprep.subr.mxu0 0.0
    %70 = vmatpush1.msra.mxu0 %v48
    %71 = vmatprep.subr.mxu0 0.0
    %72 = vmatpush1.msra.mxu0 0.0
    %73 = vmatprep.subr.mxu0 0.0
    %74 = vmatpush1.msra.mxu0 0.0
    %75 = vmatprep.subr.mxu0 0.0
    %76 = vmatpush1.msra.mxu0 0.0
    %77 = vmatprep.subr.mxu0 0.0
    %78 = vmatpush1.msra.mxu0 0.0
    %79 = vmatprep.subr.mxu0 0.0
    %80 = vmatpush1.msra.mxu0 0.0
    %81 = vmatprep.subr.mxu0 0.0
    %82 = vmatpush1.msra.mxu0 0.0
    %83 = vmatprep.subr.mxu0 0.0
    %84 = vmatpush1.msra.mxu0 0.0
    %85 = vmatprep.subr.mxu0 0.0
    %86 = vmatpush1.msra.mxu0 0.0
    %87 = vmatprep.subr.mxu0 0.0
    %88 = vmatpush1.msra.mxu0 0.0
    %89 = vmatprep.subr.mxu0 0.0
    %90 = vmatpush1.msra.mxu0 0.0
    %91 = vmatprep.subr.mxu0 0.0
    %92 = vmatpush1.msra.mxu0 0.0
    %93 = vmatprep.subr.mxu0 0.0
    %94 = vmatpush1.msra.mxu0 0.0
    %95 = vmatprep.subr.mxu0 0.0
    %96 = vmatpush1.msra.mxu0 0.0
    %97 = vmatprep.subr.mxu0 0.0
    %98 = vmatpush1.msra.mxu0 0.0
    %99 = vmatprep.subr.mxu0 0.0
    %100 = vmatpush1.msra.mxu0 0.0
    %101 = vmatprep.subr.mxu0 0.0
    %102 = vmatpush1.msra.mxu0 0.0
    %103 = vmatprep.subr.mxu0 0.0
    %104 = vmatpush1.msra.mxu0 0.0
    %105 = vmatprep.subr.mxu0 0.0
    %106 = vmatpush1.msra.mxu0 0.0
    %107 = vmatprep.subr.mxu0 0.0
    %108 = vmatpush1.msra.mxu0 0.0
    %109 = vmatprep.subr.mxu0 0.0
    %110 = vmatpush1.msra.mxu0 0.0
    %111 = vmatprep.subr.mxu0 0.0
    %112 = vmatpush1.msra.mxu0 0.0
    %113 = vmatprep.subr.mxu0 0.0
    %114 = vmatpush1.msra.mxu0 0.0
    %115 = vmatprep.subr.mxu0 0.0
    %116 = vmatpush1.msra.mxu0 0.0
    %117 = vmatprep.subr.mxu0 0.0
    %118 = vmatpush1.msra.mxu0 0.0
    %119 = vmatprep.subr.mxu0 0.0
    %120 = vmatpush1.msra.mxu0 0.0
    %121 = vmatprep.subr.mxu0 0.0
    %122 = vmatpush1.msra.mxu0 0.0
    %123 = vmatprep.subr.mxu0 0.0
    %124 = vmatpush1.msra.mxu0 0.0
    %125 = vmatprep.subr.mxu0 0.0
    %126 = vmatpush1.msra.mxu0 0.0
    %127 = vmatprep.mubr.f32.mxu0 0.0
    %128 = vmatmul.mubr.f32.gmra.mrb[0].mxu0 %v58
    %v129 = vpop.f32.mrb[0].mxu0
    %v130 = vadd.f32 %v54, %v129
    %v131 = vpop.f32.mrb[0].mxu0
    %132 = vmatprep.mubr.f32.mxu0 0.0
    %133 = vmatmul.mubr.f32.gmra.mrb[0].mxu0 %v61
    %v134 = vpop.f32.mrb[0].mxu0
    %v135 = vadd.f32 %v54, %v134
    %v136 = vpop.f32.mrb[0].mxu0
    %137 = vdwg.mxu0
    %vm138 = vcmask 785408
    %139 = vst.msk [vmem:[#allocation7] sm:$0xff] %vm138, %v130
    %140 = vst.msk [vmem:[#allocation7 + $0x8] sm:$0xff] %vm138, %v135
    // Predicated region
    $region22: #{tpu_custom_call.1} parent=1 // pred_check
      _
    $region23: #{tpu_custom_call.1} parent=1 // pred_check_branch
      %142 = sbr.rel (0) target = $region25
    $region24: #{tpu_custom_call.1} parent=1 // pred_region
      %s144 = ssub.s32 256, 256
      %145 = vsyncadd [#allocation4], %s144
      %s146 = sshll.u32 [#allocation7], 4
      %s147 = int_to_ptr.vmem [resolvable:$true] %s146
      %152 = dma.vmem_to_hbm [thread:$0]  %s147, 256, %s3, [#allocation4], 128, 128, 8
    $region25: #{tpu_custom_call.1} parent=1 // pred_fallthru
      _
    // Predicated region
    $region26: #{tpu_custom_call.1} parent=1 // pred_check
      _
    $region27: #{tpu_custom_call.1} parent=1 // pred_check_branch
      %154 = sbr.rel (0) target = $region29
    $region28: #{tpu_custom_call.1} parent=1 // pred_region
      %155 = dma.done [#allocation4], 256
    $region29: #{tpu_custom_call.1} parent=1 // pred_fallthru
      _
    %156 = vsyncpa [#allocation3], 1
    %157 = vsyncpa [#allocation6], 1
    %158 = vsyncpa [#allocation4], 1

</llo_original>
